<compile_context>
chip_gen: v7x
topology: tpu7x:2x2x1
jax: 0.10.0
libtpu: 0.0.40
codegen_flags: <defaults>
</compile_context>

<pallas_src>
import jax
import jax.numpy as jnp
from jax.experimental import pallas as pl
from jax.experimental.pallas import tpu as pltpu

_LANE = 128


def _abc_kernel(x_ref, o_ref):
    # Elementwise hot path: sin -> sin -> cos on the VPU/EUP.
    # Compute in f32 regardless of the storage dtype (v5e has no bf16 EUP path).
    x = x_ref[...].astype(jnp.float32)
    y = jnp.cos(jnp.sin(jnp.sin(x)))
    o_ref[...] = y.astype(o_ref.dtype)


def _min_sublane(dtype) -> int:
    itemsize = jnp.dtype(dtype).itemsize
    if itemsize >= 4:
        return 8
    if itemsize == 2:
        return 16
    return 32


def abc_forward(x):
    """Applies cos(sin(sin(x))) elementwise, matching ABC.forward."""
    orig_shape = x.shape
    orig_dtype = x.dtype

    n = x.size
    itemsize = jnp.dtype(orig_dtype).itemsize
    sublane = _min_sublane(orig_dtype)
    tile_elems = _LANE * sublane

    flat = x.reshape(-1)
    pad = (-n) % tile_elems
    if pad:
        # jnp.pad (no concatenate copy of a second buffer); usually skipped.
        flat = jnp.pad(flat, (0, pad))
    rows = flat.shape[0] // _LANE
    slab = flat.reshape(rows, _LANE)

    # Target ~4 MiB per block: in+out x 2-deep pipelining = ~16 MiB VMEM,
    # comfortably under the 32 MiB scoped default on v7x (and v5e/v6e).
    target_block_bytes = 4 * 1024 * 1024
    block_rows = min(rows, max(sublane, target_block_bytes // (_LANE * itemsize)))
    block_rows = max(sublane, (block_rows // sublane) * sublane)

    # Ensure >= 2 grid steps when the data allows it, so the "parallel" axis
    # actually shards across both TensorCores on v7x.
    if rows > sublane and pl.cdiv(rows, block_rows) < 2:
        half = (rows // 2 // sublane) * sublane
        if half >= sublane:
            block_rows = half

    grid = (pl.cdiv(rows, block_rows),)

    out_slab = pl.pallas_call(
        _abc_kernel,
        out_shape=jax.ShapeDtypeStruct((rows, _LANE), orig_dtype),
        grid_spec=pltpu.PrefetchScalarGridSpec(
            num_scalar_prefetch=0,
            grid=grid,
            in_specs=[pl.BlockSpec((block_rows, _LANE), lambda i: (i, 0))],
            out_specs=pl.BlockSpec((block_rows, _LANE), lambda i: (i, 0)),
        ),
        compiler_params=pltpu.CompilerParams(
            dimension_semantics=("parallel",),
        ),
    )(slab)

    out_flat = out_slab.reshape(-1)
    if pad:
        out_flat = out_flat[:n]
    return out_flat.reshape(orig_shape)


if __name__ == "__main__":
    key = jax.random.PRNGKey(0)
    # Small NCHW-style input consistent with the torch module's usage.
    x = jax.random.normal(key, (2, 4, 16, 16), dtype=jnp.float32)

    y = abc_forward(x)
    jax.block_until_ready(y)

    # Sanity-check against the plain JAX reference (XLA-fused path).
    ref = jnp.cos(jnp.sin(jnp.sin(x)))
    assert y.shape == x.shape and y.dtype == x.dtype
    assert jnp.allclose(y, ref, atol=1e-5, rtol=1e-5)

    print("KERNEL_OK")
</pallas_src>

<mosaic_0001>
module attributes {stable_mosaic.version = 11 : i64} {
  func.func @_abc_kernel(%arg0: i32, %arg1: memref<8x128xf32, #tpu.memory_space<vmem>>, %arg2: memref<8x128xf32, #tpu.memory_space<vmem>>) attributes {dimension_semantics = [#tpu.dimension_semantics<parallel>], iteration_bounds = array<i64: 2>, scalar_prefetch = 0 : i64, scratch_operands = 0 : i64, tpu.core_type = #tpu.core_type<tc>, window_params = [{transform_indices = @transform_0, window_bounds = array<i64: 8, 128>}, {transform_indices = @transform_1, window_bounds = array<i64: 8, 128>}]} {
    %c0 = arith.constant 0 : index
    %c0_0 = arith.constant 0 : index
    %0 = vector.load %arg1[%c0, %c0_0] : memref<8x128xf32, #tpu.memory_space<vmem>>, vector<8x128xf32>
    %1 = math.sin %0 : vector<8x128xf32>
    %2 = math.sin %1 : vector<8x128xf32>
    %3 = math.cos %2 : vector<8x128xf32>
    %c0_1 = arith.constant 0 : index
    %c0_2 = arith.constant 0 : index
    %4 = vector.load %arg2[%c0_1, %c0_2] : memref<8x128xf32, #tpu.memory_space<vmem>>, vector<8x128xf32>
    tpu.vector_store %arg2[%c0_1, %c0_2], %3 {strides = array<i32>} : memref<8x128xf32, #tpu.memory_space<vmem>>, vector<8x128xf32>,
    return
  }
  func.func @transform_0(%arg0: i32) -> (i32, i32) {
    %c0_i32 = arith.constant 0 : i32
    %c0_i32_0 = arith.constant 0 : i32
    return %arg0, %c0_i32 : i32, i32
  }
  func.func @transform_1(%arg0: i32) -> (i32, i32) {
    %c0_i32 = arith.constant 0 : i32
    %c0_i32_0 = arith.constant 0 : i32
    return %arg0, %c0_i32 : i32, i32
  }
}

</mosaic_0001>

<llo_original>
// kernel: tpu_custom_call.1
$region0: #{tpu_custom_call.1}
  #allocation0 [shape = 'u32[]', space=smem, size = 0x4, offset = 0x4, fixed_abs, tag = 'smem constant byte address 0x4 - core index']
  #allocation1 [shape = 'u32[144,128]{1,0:T(1,128)}', space=vmem, size = 0x12000, scoped, tag = 'internal scratch']
  %s0 = inlined_call_operand.hbm [shape: f32[16,128], index: 0, kind: input, shape index: {}]
  %s1 = inlined_call_operand.hbm [shape: f32[16,128], index: 1, kind: output, shape index: {}]
  %s2 = sld [smem:[#allocation0]]
  $region41: #{tpu_custom_call.1} parent=0
    _
  %s4 = ssub.s32 1, %s2
  %s5 = scalar_select 0, %s4, %s2
  $region1: #{tpu_custom_call.1} parent=0
    #allocation2 [shape = 'u8[8192]{0}', space=vmem, size = 0x2000, scoped, tag = 'input window, operand 0']
    #allocation3 [shape = 's32[2]{0}', space=sflag, size = 0x8, scoped, tag = 'scoped memory for tpu_custom_call.1']
    #allocation4 [shape = 's32[2]{0}', space=sflag, size = 0x8, scoped, tag = 'scoped memory for tpu_custom_call.1']
    #allocation5 [shape = 'u8[8192]{0}', space=vmem, size = 0x2000, scoped, tag = 'output window, operand 0']
    %6 = vsyncpa [#allocation3], 0
    %s7 = scalar_lea.sflag [#allocation3], 1
    %8 = vsyncpa %s7, 0
    %9 = vsyncpa [#allocation4], 0
    %s10 = scalar_lea.sflag [#allocation4], 1
    %11 = vsyncpa %s10, 0
    loop: start=0, step=1, limit=4
    $region2: #{tpu_custom_call.1} parent=1 // loop_pre_header
      _
    $region3: #{tpu_custom_call.1} parent=1 // loop_header
      %s13 = sphi 0, %s17
      %p14 = scmp.ge.s32.totalorder %s13, 4
      %s23 = sphi 0, %s25
      %s26 = sphi 0, %s23
      %s27 = sphi 0, %s26
      %s43 = sphi 0, %s27
      %s49 = sphi 0, %s51
      %s52 = sphi 0, %s49
      %s53 = sphi 0, %s52
      %s69 = sphi 0, %s53
    $region4: #{tpu_custom_call.1} parent=1 // loop_header_branch
      %16 = sbr.rel (%p14) target = $region8
    $region5: #{tpu_custom_call.1} parent=1 // loop_body
      %s18 = ssub.s32 %s13, 1
      %s19 = ssub.s32 %s13, 2
      %s20 = sadd.s32 %s13, 1
      %s21 = ssub.s32 %s13, %s20
      %p22 = scmp.eq.s32.totalorder %s21, 0
      %s24 = sadd.s32 %s23, 1
      %s25 = scalar_select %p22, %s23, %s24
      %p28 = pneg %p22
      %p29 = scmp.eq.s32.totalorder %s13, 1
      %p30 = por %p28, %p29
      %p31 = scmp.ne.s32.totalorder %s23, %s26
      %p32 = scmp.eq.s32.totalorder %s13, 0
      %p33 = por %p31, %p32
      %p34 = scmp.ne.s32.totalorder %s23, %s26
      %p35 = scmp.eq.s32.totalorder %s18, 1
      %p36 = por %p34, %p35
      %p37 = scmp.ne.s32.totalorder %s26, %s27
      %p38 = scmp.eq.s32.totalorder %s18, 0
      %p39 = por %p37, %p38
      %p40 = scmp.ne.s32.totalorder %s26, %s27
      %p41 = scmp.eq.s32.totalorder %s19, 1
      %p42 = por %p40, %p41
      %p44 = scmp.ne.s32.totalorder %s27, %s43
      %p45 = scmp.eq.s32.totalorder %s19, 0
      %p46 = por %p44, %p45
      %s47 = ssub.s32 %s13, %s20
      %p48 = scmp.eq.s32.totalorder %s47, 0
      %s50 = sadd.s32 %s49, 1
      %s51 = scalar_select %p48, %s49, %s50
      %p54 = pneg %p48
      %p55 = scmp.eq.s32.totalorder %s13, 1
      %p56 = por %p54, %p55
      %p57 = scmp.ne.s32.totalorder %s49, %s52
      %p58 = scmp.eq.s32.totalorder %s13, 0
      %p59 = por %p57, %p58
      %p60 = scmp.ne.s32.totalorder %s49, %s52
      %p61 = scmp.eq.s32.totalorder %s18, 1
      %p62 = por %p60, %p61
      %p63 = scmp.ne.s32.totalorder %s52, %s53
      %p64 = scmp.eq.s32.totalorder %s18, 0
      %p65 = por %p63, %p64
      %p66 = scmp.ne.s32.totalorder %s52, %s53
      %p67 = scmp.eq.s32.totalorder %s19, 1
      %p68 = por %p66, %p67
      %p70 = scmp.ne.s32.totalorder %s53, %s69
      %p71 = scmp.eq.s32.totalorder %s19, 0
      %p72 = por %p70, %p71
      %p73 = scmp.le.s32.totalorder 1, %s13
      %p74 = scmp.lt.s32.totalorder %s13, 3
      %p75 = pnand %p73, %p74
      %p76 = pneg %p75
      // Predicated region
      $region9: #{tpu_custom_call.1} parent=5 // pred_check
        _
      $region10: #{tpu_custom_call.1} parent=5 // pred_check_branch
        %78 = sbr.rel (%p75) target = $region12
      $region11: #{tpu_custom_call.1} parent=5 // pred_region
        %s79 = ssub.s32 %s13, 1
      $region12: #{tpu_custom_call.1} parent=5 // pred_fallthru
        _
      %p80 = scmp.lt.s32.totalorder %s13, 2
      // Predicated region
      $region13: #{tpu_custom_call.1} parent=5 // pred_check
        %p81 = pneg %p80
      $region14: #{tpu_custom_call.1} parent=5 // pred_check_branch
        %83 = sbr.rel (%p81) target = $region16
      $region15: #{tpu_custom_call.1} parent=5 // pred_region
        // Predicated region
        $region17: #{tpu_custom_call.1} parent=15 // pred_check
          %p84 = pneg %p33
        $region18: #{tpu_custom_call.1} parent=15 // pred_check_branch
          %86 = sbr.rel (%p84) target = $region20
        $region19: #{tpu_custom_call.1} parent=15 // pred_region
          %s87 = sand.u32 %s23, 1
          %s88 = scalar_lea.sflag [#allocation3], %s87
          %s89 = sand.u32 %s23, 1
          %s90 = smul.addr %s89, 8
          %s91 = scalar_lea.vmem [#allocation2], %s90
          %s93 = ssub.s32 128, 128
          %94 = vsyncadd %s88, %s93
          %s95 = smul.addr %s13, 128
          %s96 = scalar_lea.hbm %s0, %s95
          %s98 = sshll.u32 %s91, 4
          %s99 = int_to_ptr.vmem [resolvable:$true] %s98
          %101 = dma.hbm_to_vmem [thread:$0]  %s96, 128, %s99, %s88
        $region20: #{tpu_custom_call.1} parent=15 // pred_fallthru
          _
      $region16: #{tpu_custom_call.1} parent=5 // pred_fallthru
        _
      %p102 = scmp.le.s32.totalorder 1, %s13
      %p103 = scmp.lt.s32.totalorder %s13, 3
      %p104 = pnand %p102, %p103
      %p105 = pneg %p104
      // Predicated region
      $region21: #{tpu_custom_call.1} parent=5 // pred_check
        _
      $region22: #{tpu_custom_call.1} parent=5 // pred_check_branch
        %107 = sbr.rel (%p104) target = $region24
      $region23: #{tpu_custom_call.1} parent=5 // pred_region
        %s108 = ssub.s32 %s13, 1
        %s109 = sand.u32 %s26, 1
        %s110 = scalar_lea.sflag [#allocation3], %s109
        %s111 = sand.u32 %s26, 1
        %s112 = smul.addr %s111, 8
        %s113 = scalar_lea.vmem [#allocation2], %s112
        // Predicated region
        $region25: #{tpu_custom_call.1} parent=23 // pred_check
          %p114 = pneg %p39
        $region26: #{tpu_custom_call.1} parent=23 // pred_check_branch
          %116 = sbr.rel (%p114) target = $region28
        $region27: #{tpu_custom_call.1} parent=23 // pred_region
          %117 = dma.done %s110, 128
        $region28: #{tpu_custom_call.1} parent=23 // pred_fallthru
          _
        %s118 = sand.u32 %s26, 1
        %s119 = scalar_lea.sflag [#allocation3], %s118
        %s120 = sand.u32 %s26, 1
        %s121 = smul.addr %s120, 8
        %s122 = scalar_lea.vmem [#allocation2], %s121
        %p123 = pneg %p39
        %p124 = pneg %p36
        %p125 = pneg %p65
        %p126 = pneg %p62
        %s127 = sand.u32 %s52, 1
        %s128 = scalar_lea.sflag [#allocation4], %s127
        %s129 = sand.u32 %s52, 1
        %s130 = smul.addr %s129, 8
        %s131 = scalar_lea.vmem [#allocation5], %s130
        %v132 = vld [vmem:[%s113] sm:$0xff]
        %v133 = vand.u32 2147483647, %v132
        %vm134 = vcmp.le.f32.partialorder %v133, 0.7853982
        %vm135 = vcmp.lt.s32.totalorder %v132, 0
        %v136 = vand.u32 %v132, 2139095040
        %v137 = vshrl.u32 %v136, 23
        %v138 = vsub.s32 %v137, 127
        %v139 = vand.u32 2147483647, %v132
        %v140 = vand.u32 %v139, 8388607
        %v141 = vor.u32 %v140, 8388608
        %v142 = vsub.s32 0, %v141
        %v143 = vadd.s32 %v138, 1
        %vm144 = vcmp.gt.s32.totalorder %v143, 0
        %v145 = vsel %vm144, %v143, 0
        %v146 = vshrl.u32 %v145, 5
        %v147 = vand.u32 %v145, 31
        %v148 = vsub.s32 32, %v147
        %v149 = vshrl.u32 683565275, %v148
        %v150 = vshll.u32 683565275, %v147
        %v151 = vshrl.u32 2475754826, %v148
        %v152 = vor.u32 %v150, %v151
        %v153 = vshll.u32 2475754826, %v147
        %v154 = vshrl.u32 2131351028, %v148
        %v155 = vor.u32 %v153, %v154
        %v156 = vshll.u32 2131351028, %v147
        %v157 = vshrl.u32 2102212464, %v148
        %v158 = vor.u32 %v156, %v157
        %v159 = vshll.u32 2102212464, %v147
        %v160 = vshrl.u32 920167782, %v148
        %v161 = vor.u32 %v159, %v160
        %v162 = vshll.u32 920167782, %v147
        %v163 = vshrl.u32 1326507024, %v148
        %v164 = vor.u32 %v162, %v163
        %vm165 = vcmp.lt.s32.totalorder %v146, 1
        %vm166 = vcmp.lt.s32.totalorder %v146, 2
        %vm167 = vcmp.lt.s32.totalorder %v146, 3
        %vm168 = vcmp.lt.s32.totalorder %v146, 4
        %v169 = vsel %vm165, %v149, %v152
        %v170 = vsel %vm168, %v158, 2102212464
        %v171 = vsel %vm167, %v155, %v170
        %v172 = vsel %vm166, %v169, %v171
        %v173 = vsel %vm165, %v152, %v155
        %v174 = vsel %vm168, %v161, 920167782
        %v175 = vsel %vm167, %v158, %v174
        %v176 = vsel %vm166, %v173, %v175
        %v177 = vsel %vm165, %v155, %v158
        %v178 = vsel %vm168, %v164, 1326507024
        %v179 = vsel %vm167, %v161, %v178
        %v180 = vsel %vm166, %v177, %v179
        %v181 = vshll.u32 %v141, 8
        %v182 = vmul.u32.u64.compose %v181, %v180
        %v183 = vextract.low.u32 %v182
        %v184 = vextract.high.u32 %v182
        %v185 = vmul.u32.u64.compose %v181, %v176
        %v186 = vextract.low.u32 %v185
        %v187 = vextract.high.u32 %v185
        %v188 = vmul.u32 %v181, %v172
        %v189 = vadd.s32 %v184, %v186
        %vm190 = vc.u32 %v184, %v186
        %v191 = vadd.s32 %v187, 1
        %v192 = vsel %vm190, %v191, %v187
        %v193 = vadd.s32 %v188, %v192
        %v194 = vadd.s32 %v193, 536870912
        %v195 = vshrl.u32 %v194, 30
        %v196 = vshll.u32 %v195, 30
        %v197 = vsub.s32 %v193, %v196
        %vm198 = vcmp.lt.s32.totalorder %v197, 0
        %v199 = vsub.s32 0, %v197
        %v200 = vsel %vm198, %v199, %v197
        %v201 = vclz %v200
        %v202 = vsub.s32 %v201, 2
        %vm203 = vcmp.gt.s32.totalorder 0, %v202
        %v204 = vsel %vm203, 0, %v202
        %v205 = vsub.s32 32, %v204
        %v206 = vshll.u32 %v197, %v204
        %v207 = vshrl.u32 %v189, %v205
        %v208 = vor.u32 %v206, %v207
        %v209 = vsub.s32 4294967266, %v204
        %v210 = vadd.s32 %v209, 127
        %v211 = vshll.u32 %v210, 23
        %v212 = vor.u32 4788187, %v211
        %v213 = vand.u32 2147483647, %v212
        %v215 = vcvt.s32.f32 %v208
        %v216 = vmul.f32 %v215, %v213
        %v217 = vxor.u32 %v216, 2147483648
        %v218 = vsel %vm135, %v217, %v216
        %v219 = vsub.s32 4, %v195
        %v220 = vsel %vm135, %v219, %v195
        %v221 = vsel %vm134, %v132, %v218
        %v222 = vsel %vm134, 0, %v220
        %v223 = vcosq.f32.pop %v221
        %v224 = vsinq.f32.pop %v221
        %vm225 = vweird.f32 %v132
        %v226 = vadd.s32 %v222, 3
        %v227 = vand.u32 %v226, 3
        %vm228 = vcmp.lt.s32.totalorder %v227, 2
        %vm229 = vcmp.eq.s32.totalorder %v227, 0
        %v230 = vxor.u32 %v224, 2147483648
        %v231 = vsel %vm229, %v223, %v230
        %vm232 = vcmp.eq.s32.totalorder %v227, 2
        %v233 = vxor.u32 %v223, 2147483648
        %v234 = vsel %vm232, %v233, %v224
        %v235 = vsel %vm228, %v231, %v234
        %v236 = vsel %vm225, nan, %v235
        %v237 = vand.u32 2147483647, %v236
        %vm238 = vcmp.le.f32.partialorder %v237, 0.7853982
        %vm239 = vcmp.lt.s32.totalorder %v236, 0
        %v240 = vand.u32 %v236, 2139095040
        %v241 = vshrl.u32 %v240, 23
        %v242 = vsub.s32 %v241, 127
        %v243 = vand.u32 2147483647, %v236
        %v244 = vand.u32 %v243, 8388607
        %v245 = vor.u32 %v244, 8388608
        %v246 = vsub.s32 0, %v245
        %v247 = vadd.s32 %v242, 1
        %vm248 = vcmp.gt.s32.totalorder %v247, 0
        %v249 = vsel %vm248, %v247, 0
        %v250 = vshrl.u32 %v249, 5
        %v251 = vand.u32 %v249, 31
        %v252 = vsub.s32 32, %v251
        %v253 = vshrl.u32 683565275, %v252
        %v254 = vshll.u32 683565275, %v251
        %v255 = vshrl.u32 2475754826, %v252
        %v256 = vor.u32 %v254, %v255
        %v257 = vshll.u32 2475754826, %v251
        %v258 = vshrl.u32 2131351028, %v252
        %v259 = vor.u32 %v257, %v258
        %v260 = vshll.u32 2131351028, %v251
        %v261 = vshrl.u32 2102212464, %v252
        %v262 = vor.u32 %v260, %v261
        %v263 = vshll.u32 2102212464, %v251
        %v264 = vshrl.u32 920167782, %v252
        %v265 = vor.u32 %v263, %v264
        %v266 = vshll.u32 920167782, %v251
        %v267 = vshrl.u32 1326507024, %v252
        %v268 = vor.u32 %v266, %v267
        %vm269 = vcmp.lt.s32.totalorder %v250, 1
        %vm270 = vcmp.lt.s32.totalorder %v250, 2
        %vm271 = vcmp.lt.s32.totalorder %v250, 3
        %vm272 = vcmp.lt.s32.totalorder %v250, 4
        %v273 = vsel %vm269, %v253, %v256
        %v274 = vsel %vm272, %v262, 2102212464
        %v275 = vsel %vm271, %v259, %v274
        %v276 = vsel %vm270, %v273, %v275
        %v277 = vsel %vm269, %v256, %v259
        %v278 = vsel %vm272, %v265, 920167782
        %v279 = vsel %vm271, %v262, %v278
        %v280 = vsel %vm270, %v277, %v279
        %v281 = vsel %vm269, %v259, %v262
        %v282 = vsel %vm272, %v268, 1326507024
        %v283 = vsel %vm271, %v265, %v282
        %v284 = vsel %vm270, %v281, %v283
        %v285 = vshll.u32 %v245, 8
        %v286 = vmul.u32.u64.compose %v285, %v284
        %v287 = vextract.low.u32 %v286
        %v288 = vextract.high.u32 %v286
        %v289 = vmul.u32.u64.compose %v285, %v280
        %v290 = vextract.low.u32 %v289
        %v291 = vextract.high.u32 %v289
        %v292 = vmul.u32 %v285, %v276
        %v293 = vadd.s32 %v288, %v290
        %vm294 = vc.u32 %v288, %v290
        %v295 = vadd.s32 %v291, 1
        %v296 = vsel %vm294, %v295, %v291
        %v297 = vadd.s32 %v292, %v296
        %v298 = vadd.s32 %v297, 536870912
        %v299 = vshrl.u32 %v298, 30
        %v300 = vshll.u32 %v299, 30
        %v301 = vsub.s32 %v297, %v300
        %vm302 = vcmp.lt.s32.totalorder %v301, 0
        %v303 = vsub.s32 0, %v301
        %v304 = vsel %vm302, %v303, %v301
        %v305 = vclz %v304
        %v306 = vsub.s32 %v305, 2
        %vm307 = vcmp.gt.s32.totalorder 0, %v306
        %v308 = vsel %vm307, 0, %v306
        %v309 = vsub.s32 32, %v308
        %v310 = vshll.u32 %v301, %v308
        %v311 = vshrl.u32 %v293, %v309
        %v312 = vor.u32 %v310, %v311
        %v313 = vsub.s32 4294967266, %v308
        %v314 = vadd.s32 %v313, 127
        %v315 = vshll.u32 %v314, 23
        %v316 = vor.u32 4788187, %v315
        %v317 = vand.u32 2147483647, %v316
        %v319 = vcvt.s32.f32 %v312
        %v320 = vmul.f32 %v319, %v317
        %v321 = vxor.u32 %v320, 2147483648
        %v322 = vsel %vm239, %v321, %v320
        %v323 = vsub.s32 4, %v299
        %v324 = vsel %vm239, %v323, %v299
        %v325 = vsel %vm238, %v236, %v322
        %v326 = vsel %vm238, 0, %v324
        %v327 = vcosq.f32.pop %v325
        %v328 = vsinq.f32.pop %v325
        %vm329 = vweird.f32 %v236
        %v330 = vadd.s32 %v326, 3
        %v331 = vand.u32 %v330, 3
        %vm332 = vcmp.lt.s32.totalorder %v331, 2
        %vm333 = vcmp.eq.s32.totalorder %v331, 0
        %v334 = vxor.u32 %v328, 2147483648
        %v335 = vsel %vm333, %v327, %v334
        %vm336 = vcmp.eq.s32.totalorder %v331, 2
        %v337 = vxor.u32 %v327, 2147483648
        %v338 = vsel %vm336, %v337, %v328
        %v339 = vsel %vm332, %v335, %v338
        %v340 = vsel %vm329, nan, %v339
        %v341 = vand.u32 2147483647, %v340
        %vm342 = vcmp.le.f32.partialorder %v341, 0.7853982
        %vm343 = vcmp.lt.s32.totalorder %v340, 0
        %v344 = vand.u32 %v340, 2139095040
        %v345 = vshrl.u32 %v344, 23
        %v346 = vsub.s32 %v345, 127
        %v347 = vand.u32 2147483647, %v340
        %v348 = vand.u32 %v347, 8388607
        %v349 = vor.u32 %v348, 8388608
        %v350 = vsub.s32 0, %v349
        %v351 = vadd.s32 %v346, 1
        %vm352 = vcmp.gt.s32.totalorder %v351, 0
        %v353 = vsel %vm352, %v351, 0
        %v354 = vshrl.u32 %v353, 5
        %v355 = vand.u32 %v353, 31
        %v356 = vsub.s32 32, %v355
        %v357 = vshrl.u32 683565275, %v356
        %v358 = vshll.u32 683565275, %v355
        %v359 = vshrl.u32 2475754826, %v356
        %v360 = vor.u32 %v358, %v359
        %v361 = vshll.u32 2475754826, %v355
        %v362 = vshrl.u32 2131351028, %v356
        %v363 = vor.u32 %v361, %v362
        %v364 = vshll.u32 2131351028, %v355
        %v365 = vshrl.u32 2102212464, %v356
        %v366 = vor.u32 %v364, %v365
        %v367 = vshll.u32 2102212464, %v355
        %v368 = vshrl.u32 920167782, %v356
        %v369 = vor.u32 %v367, %v368
        %v370 = vshll.u32 920167782, %v355
        %v371 = vshrl.u32 1326507024, %v356
        %v372 = vor.u32 %v370, %v371
        %vm373 = vcmp.lt.s32.totalorder %v354, 1
        %vm374 = vcmp.lt.s32.totalorder %v354, 2
        %vm375 = vcmp.lt.s32.totalorder %v354, 3
        %vm376 = vcmp.lt.s32.totalorder %v354, 4
        %v377 = vsel %vm373, %v357, %v360
        %v378 = vsel %vm376, %v366, 2102212464
        %v379 = vsel %vm375, %v363, %v378
        %v380 = vsel %vm374, %v377, %v379
        %v381 = vsel %vm373, %v360, %v363
        %v382 = vsel %vm376, %v369, 920167782
        %v383 = vsel %vm375, %v366, %v382
        %v384 = vsel %vm374, %v381, %v383
        %v385 = vsel %vm373, %v363, %v366
        %v386 = vsel %vm376, %v372, 1326507024
        %v387 = vsel %vm375, %v369, %v386
        %v388 = vsel %vm374, %v385, %v387
        %v389 = vshll.u32 %v349, 8
        %v390 = vmul.u32.u64.compose %v389, %v388
        %v391 = vextract.low.u32 %v390
        %v392 = vextract.high.u32 %v390
        %v393 = vmul.u32.u64.compose %v389, %v384
        %v394 = vextract.low.u32 %v393
        %v395 = vextract.high.u32 %v393
        %v396 = vmul.u32 %v389, %v380
        %v397 = vadd.s32 %v392, %v394
        %vm398 = vc.u32 %v392, %v394
        %v399 = vadd.s32 %v395, 1
        %v400 = vsel %vm398, %v399, %v395
        %v401 = vadd.s32 %v396, %v400
        %v402 = vadd.s32 %v401, 536870912
        %v403 = vshrl.u32 %v402, 30
        %v404 = vshll.u32 %v403, 30
        %v405 = vsub.s32 %v401, %v404
        %vm406 = vcmp.lt.s32.totalorder %v405, 0
        %v407 = vsub.s32 0, %v405
        %v408 = vsel %vm406, %v407, %v405
        %v409 = vclz %v408
        %v410 = vsub.s32 %v409, 2
        %vm411 = vcmp.gt.s32.totalorder 0, %v410
        %v412 = vsel %vm411, 0, %v410
        %v413 = vsub.s32 32, %v412
        %v414 = vshll.u32 %v405, %v412
        %v415 = vshrl.u32 %v397, %v413
        %v416 = vor.u32 %v414, %v415
        %v417 = vsub.s32 4294967266, %v412
        %v418 = vadd.s32 %v417, 127
        %v419 = vshll.u32 %v418, 23
        %v420 = vor.u32 4788187, %v419
        %v421 = vand.u32 2147483647, %v420
        %v423 = vcvt.s32.f32 %v416
        %v424 = vmul.f32 %v423, %v421
        %v425 = vxor.u32 %v424, 2147483648
        %v426 = vsel %vm343, %v425, %v424
        %v427 = vsub.s32 4, %v403
        %v428 = vsel %vm343, %v427, %v403
        %v429 = vsel %vm342, %v340, %v426
        %v430 = vsel %vm342, 0, %v428
        %v431 = vcosq.f32.pop %v429
        %v432 = vsinq.f32.pop %v429
        %vm433 = vweird.f32 %v340
        %v434 = vand.u32 %v430, 3
        %vm435 = vcmp.lt.s32.totalorder %v434, 2
        %vm436 = vcmp.eq.s32.totalorder %v434, 0
        %v437 = vxor.u32 %v432, 2147483648
        %v438 = vsel %vm436, %v431, %v437
        %vm439 = vcmp.eq.s32.totalorder %v434, 2
        %v440 = vxor.u32 %v431, 2147483648
        %v441 = vsel %vm439, %v440, %v432
        %v442 = vsel %vm435, %v438, %v441
        %v443 = vsel %vm433, nan, %v442
        %444 = vst [vmem:[%s131] sm:$0xff] %v443
        %s445 = sand.u32 %s52, 1
        %s446 = scalar_lea.sflag [#allocation4], %s445
        %s447 = sand.u32 %s52, 1
        %s448 = smul.addr %s447, 8
        %s449 = scalar_lea.vmem [#allocation5], %s448
        // Predicated region
        $region29: #{tpu_custom_call.1} parent=23 // pred_check
          %p450 = pneg %p62
        $region30: #{tpu_custom_call.1} parent=23 // pred_check_branch
          %452 = sbr.rel (%p450) target = $region32
        $region31: #{tpu_custom_call.1} parent=23 // pred_region
          %s454 = ssub.s32 128, 128
          %455 = vsyncadd %s446, %s454
          %s456 = smul.addr %s18, 128
          %s457 = scalar_lea.hbm %s1, %s456
          %s459 = sshll.u32 %s449, 4
          %s460 = int_to_ptr.vmem [resolvable:$true] %s459
          %462 = dma.vmem_to_hbm [thread:$0]  %s460, 128, %s457, %s446
        $region32: #{tpu_custom_call.1} parent=23 // pred_fallthru
          _
      $region24: #{tpu_custom_call.1} parent=5 // pred_fallthru
        _
      %p463 = scmp.le.s32.totalorder 2, %s13
      // Predicated region
      $region33: #{tpu_custom_call.1} parent=5 // pred_check
        %p464 = pneg %p463
      $region34: #{tpu_custom_call.1} parent=5 // pred_check_branch
        %466 = sbr.rel (%p464) target = $region36
      $region35: #{tpu_custom_call.1} parent=5 // pred_region
        %s467 = ssub.s32 %s13, 2
        // Predicated region
        $region37: #{tpu_custom_call.1} parent=35 // pred_check
          %p468 = pneg %p68
        $region38: #{tpu_custom_call.1} parent=35 // pred_check_branch
          %470 = sbr.rel (%p468) target = $region40
        $region39: #{tpu_custom_call.1} parent=35 // pred_region
          %s471 = sand.u32 %s53, 1
          %s472 = scalar_lea.sflag [#allocation4], %s471
          %s473 = sand.u32 %s53, 1
          %s474 = smul.addr %s473, 8
          %s475 = scalar_lea.vmem [#allocation5], %s474
          %476 = dma.done %s472, 128
        $region40: #{tpu_custom_call.1} parent=35 // pred_fallthru
          _
      $region36: #{tpu_custom_call.1} parent=5 // pred_fallthru
        _
    $region6: #{tpu_custom_call.1} parent=1 // loop_footer
      %s17 = sadd.s32 1, %s13
    $region7: #{tpu_custom_call.1} parent=1 // loop_footer_branch
      %12 = sbr.rel target = $region3
    $region8: #{tpu_custom_call.1} parent=1 // loop_exit
      _
    %477 = vsyncpa [#allocation3], 1
    %s478 = scalar_lea.sflag [#allocation3], 1
    %479 = vsyncpa %s478, 1
    %480 = vsyncpa [#allocation4], 1
    %s481 = scalar_lea.sflag [#allocation4], 1
    %482 = vsyncpa %s481, 1

</llo_original>
